<compile_context>
chip_gen: v7x
topology: tpu7x:2x2x1
jax: 0.10.0
libtpu: 0.0.40
codegen_flags: <defaults>
</compile_context>

<pallas_src>
import functools

import jax
import jax.numpy as jnp
from jax import lax
from jax.experimental import pallas as pl
from jax.experimental.pallas import tpu as pltpu

_EPS = 1e-5
_VMEM_LIMIT = 32 * 1024 * 1024  # conservative; fine on v5e/v6e/v7x


def _choose_l_tile(L, C, itemsize):
    """Largest multiple-of-128 divisor of L within a ~2 MiB/tile budget.

    Falls back to the full row (Lt == L) when L is not a multiple of 128, which
    is always a legal block shape (block dim == full array dim).
    """
    if L % 128 != 0:
        return L
    budget_lanes = max(128, ((2 << 20) // max(1, C * itemsize)) // 128 * 128)
    lt = 128
    t = 256
    while t <= min(L, budget_lanes):
        if L % t == 0:
            lt = t
        t += 128
    return lt


def _stats_kernel(x_ref, sum_ref, sq_ref, acc_s, acc_q):
    """Per-batch-element, per-channel sum and sum-of-squares over L.

    x_ref   : VMEM (C, Lt)      input tile (any float dtype)
    sum_ref : VMEM (C, 1) f32   per-channel sum for this n   (written at last l)
    sq_ref  : VMEM (C, 1) f32   per-channel sum of squares   (written at last l)
    acc_s/q : VMEM (C, Wacc) f32 scratch accumulators (VPU adds only)
    """
    l = pl.program_id(1)
    nl = pl.num_programs(1)

    @pl.when(l == 0)
    def _init():
        acc_s[...] = jnp.zeros_like(acc_s)
        acc_q[...] = jnp.zeros_like(acc_q)

    x = x_ref[...].astype(jnp.float32)          # (C, Lt)
    lt = x.shape[1]
    w = acc_s.shape[1]                          # accumulator lane width (divides lt)

    s = acc_s[...]
    q = acc_q[...]
    for k in range(lt // w):                    # static, unrolled: pure VPU adds
        chunk = x[:, k * w:(k + 1) * w]
        s = s + chunk
        q = q + chunk * chunk
    acc_s[...] = s
    acc_q[...] = q

    @pl.when(l == nl - 1)
    def _emit():                                # one XLU lane-reduce per stat per n
        sum_ref[...] = jnp.sum(s, axis=1, keepdims=True)
        sq_ref[...] = jnp.sum(q, axis=1, keepdims=True)


def _norm_kernel(a_ref, b_ref, x_ref, o_ref):
    """y = x * a + b with per-channel a, b (resident (C, 1) blocks)."""
    x = x_ref[...].astype(jnp.float32)
    o_ref[...] = (x * a_ref[...] + b_ref[...]).astype(o_ref.dtype)


@functools.partial(jax.jit, static_argnames=("idx",))
def dual_bn2d(x_nchw, idx, gamma_c, beta_c, gamma_a, beta_a):
    """DualBN2d forward. x_nchw: (N, C, H, W); idx in {0, 1} (Python int)."""
    assert idx in (0, 1), "idx not in (0,1)"
    gamma = (gamma_c if idx == 0 else gamma_a).astype(jnp.float32)
    beta = (beta_c if idx == 0 else beta_a).astype(jnp.float32)

    N, C, H, W = x_nchw.shape
    L = H * W
    x = x_nchw.reshape(N, C, L)                 # free view, no transpose

    itemsize = jnp.dtype(x.dtype).itemsize
    lt = _choose_l_tile(L, C, itemsize)
    nl = L // lt
    acc_w = 128 if lt % 128 == 0 else lt
    x_bytes = int(N * C * L * itemsize)

    # ---- pass 1: per-(n, channel) sum / sum-of-squares -----------------------
    sums, sqs = pl.pallas_call(
        _stats_kernel,
        out_shape=(jax.ShapeDtypeStruct((N, C, 1), jnp.float32),
                   jax.ShapeDtypeStruct((N, C, 1), jnp.float32)),
        grid=(N, nl),
        in_specs=[pl.BlockSpec((None, C, lt), lambda n, l: (n, 0, l))],
        out_specs=(pl.BlockSpec((None, C, 1), lambda n, l: (n, 0, 0)),
                   pl.BlockSpec((None, C, 1), lambda n, l: (n, 0, 0))),
        scratch_shapes=[pltpu.VMEM((C, acc_w), jnp.float32),
                        pltpu.VMEM((C, acc_w), jnp.float32)],
        compiler_params=pltpu.CompilerParams(
            dimension_semantics=("parallel", "arbitrary"),
            vmem_limit_bytes=_VMEM_LIMIT),
        cost_estimate=pl.CostEstimate(
            flops=int(3 * N * C * L), transcendentals=0,
            bytes_accessed=x_bytes + int(2 * N * C * 4)),
    )(x)

    # ---- tiny glue: global mean/var, fold affine params into a, b ------------
    count = jnp.float32(N * L)
    s1 = jnp.sum(sums, axis=0)[:, 0]            # (C,)
    s2 = jnp.sum(sqs, axis=0)[:, 0]             # (C,)
    mean = s1 / count
    var = jnp.maximum(s2 / count - mean * mean, 0.0)   # biased variance
    inv = lax.rsqrt(var + _EPS)
    a = (gamma * inv).reshape(C, 1)
    b = (beta - mean * gamma * inv).reshape(C, 1)

    # ---- pass 2: normalize ----------------------------------------------------
    out = pl.pallas_call(
        _norm_kernel,
        out_shape=jax.ShapeDtypeStruct((N, C, L), x.dtype),
        grid=(N, nl),
        in_specs=[pl.BlockSpec((C, 1), lambda n, l: (0, 0)),
                  pl.BlockSpec((C, 1), lambda n, l: (0, 0)),
                  pl.BlockSpec((None, C, lt), lambda n, l: (n, 0, l))],
        out_specs=pl.BlockSpec((None, C, lt), lambda n, l: (n, 0, l)),
        compiler_params=pltpu.CompilerParams(
            dimension_semantics=("parallel", "parallel"),
            vmem_limit_bytes=_VMEM_LIMIT),
        cost_estimate=pl.CostEstimate(
            flops=int(2 * N * C * L), transcendentals=0,
            bytes_accessed=int(2 * x_bytes)),
    )(a, b, x)

    return out.reshape(N, C, H, W)              # free view, no transpose


def _reference(x_nchw, idx, gamma_c, beta_c, gamma_a, beta_a):
    g = gamma_c if idx == 0 else gamma_a
    b = beta_c if idx == 0 else beta_a
    mean = jnp.mean(x_nchw, axis=(0, 2, 3), keepdims=True)
    var = jnp.mean((x_nchw - mean) ** 2, axis=(0, 2, 3), keepdims=True)
    xn = (x_nchw - mean) / jnp.sqrt(var + _EPS)
    return xn * g.reshape(1, -1, 1, 1) + b.reshape(1, -1, 1, 1)


if __name__ == "__main__":
    N, C, H, W = 2, 4, 16, 16

    key = jax.random.PRNGKey(0)
    kx, kgc, kbc, kga, kba = jax.random.split(key, 5)

    x = jax.random.normal(kx, (N, C, H, W), dtype=jnp.float32)

    # PyTorch default init is weight=1, bias=0; perturb so BN_c and BN_a differ.
    gamma_c = 1.0 + 0.1 * jax.random.normal(kgc, (C,), dtype=jnp.float32)
    beta_c = 0.1 * jax.random.normal(kbc, (C,), dtype=jnp.float32)
    gamma_a = 1.0 + 0.1 * jax.random.normal(kga, (C,), dtype=jnp.float32)
    beta_a = 0.1 * jax.random.normal(kba, (C,), dtype=jnp.float32)

    ok = True
    for idx in (0, 1):
        out = jax.block_until_ready(
            dual_bn2d(x, idx, gamma_c, beta_c, gamma_a, beta_a))
        ref = _reference(x, idx, gamma_c, beta_c, gamma_a, beta_a)
        ok = ok and bool(jnp.allclose(out, ref, atol=1e-4, rtol=1e-4))

    assert ok, "Pallas DualBN2d output mismatch vs reference"
    print("KERNEL_OK")
</pallas_src>

<mosaic_0001>
module attributes {stable_mosaic.version = 11 : i64} {
  func.func @_stats_kernel(%arg0: i32, %arg1: i32, %arg2: memref<1x4x256xf32, #tpu.memory_space<vmem>>, %arg3: memref<1x4x1xf32, #tpu.memory_space<vmem>>, %arg4: memref<1x4x1xf32, #tpu.memory_space<vmem>>, %arg5: memref<4x128xf32, #tpu.memory_space<vmem>>, %arg6: memref<4x128xf32, #tpu.memory_space<vmem>>) attributes {dimension_semantics = [#tpu.dimension_semantics<parallel>, #tpu.dimension_semantics<arbitrary>], iteration_bounds = array<i64: 2, 1>, scalar_prefetch = 0 : i64, scratch_operands = 2 : i64, tpu.core_type = #tpu.core_type<tc>, window_params = [{transform_indices = @transform_0, window_bounds = array<i64: 1, 4, 256>}, {transform_indices = @transform_1, window_bounds = array<i64: 1, 4, 1>}, {transform_indices = @transform_2, window_bounds = array<i64: 1, 4, 1>}]} {
    %c0_i32 = arith.constant 0 : i32
    %0 = arith.cmpi eq, %arg1, %c0_i32 : i32
    %1 = arith.extui %0 : i1 to i32
    %c0_i32_0 = arith.constant 0 : i32
    %2 = arith.cmpi ne, %1, %c0_i32_0 : i32
    scf.if %2 {
      %cst = arith.constant 0.000000e+00 : f32
      %20 = vector.broadcast %cst : f32 to vector<4x128xf32>
      %c0_13 = arith.constant 0 : index
      %c0_14 = arith.constant 0 : index
      %21 = vector.load %arg5[%c0_13, %c0_14] : memref<4x128xf32, #tpu.memory_space<vmem>>, vector<4x128xf32>
      tpu.vector_store %arg5[%c0_13, %c0_14], %20 {strides = array<i32>} : memref<4x128xf32, #tpu.memory_space<vmem>>, vector<4x128xf32>,
      %cst_15 = arith.constant 0.000000e+00 : f32
      %22 = vector.broadcast %cst_15 : f32 to vector<4x128xf32>
      %c0_16 = arith.constant 0 : index
      %c0_17 = arith.constant 0 : index
      %23 = vector.load %arg6[%c0_16, %c0_17] : memref<4x128xf32, #tpu.memory_space<vmem>>, vector<4x128xf32>
      tpu.vector_store %arg6[%c0_16, %c0_17], %22 {strides = array<i32>} : memref<4x128xf32, #tpu.memory_space<vmem>>, vector<4x128xf32>,
    } else {
    }
    %c0 = arith.constant 0 : index
    %c0_1 = arith.constant 0 : index
    %c0_2 = arith.constant 0 : index
    %3 = vector.load %arg2[%c0, %c0_1, %c0_2] : memref<1x4x256xf32, #tpu.memory_space<vmem>>, vector<1x4x256xf32>
    %4 = vector.shape_cast %3 : vector<1x4x256xf32> to vector<4x256xf32>
    %c0_3 = arith.constant 0 : index
    %c0_4 = arith.constant 0 : index
    %5 = vector.load %arg5[%c0_3, %c0_4] : memref<4x128xf32, #tpu.memory_space<vmem>>, vector<4x128xf32>
    %c0_5 = arith.constant 0 : index
    %c0_6 = arith.constant 0 : index
    %6 = vector.load %arg6[%c0_5, %c0_6] : memref<4x128xf32, #tpu.memory_space<vmem>>, vector<4x128xf32>
    %7 = vector.extract_strided_slice %4 {offsets = [0, 0], sizes = [4, 128], strides = [1, 1]} : vector<4x256xf32> to vector<4x128xf32>
    %8 = arith.addf %5, %7 : vector<4x128xf32>
    %9 = arith.mulf %7, %7 : vector<4x128xf32>
    %10 = arith.addf %6, %9 : vector<4x128xf32>
    %11 = vector.extract_strided_slice %4 {offsets = [0, 128], sizes = [4, 128], strides = [1, 1]} : vector<4x256xf32> to vector<4x128xf32>
    %12 = arith.addf %8, %11 : vector<4x128xf32>
    %13 = arith.mulf %11, %11 : vector<4x128xf32>
    %14 = arith.addf %10, %13 : vector<4x128xf32>
    %c0_7 = arith.constant 0 : index
    %c0_8 = arith.constant 0 : index
    %15 = vector.load %arg5[%c0_7, %c0_8] : memref<4x128xf32, #tpu.memory_space<vmem>>, vector<4x128xf32>
    tpu.vector_store %arg5[%c0_7, %c0_8], %12 {strides = array<i32>} : memref<4x128xf32, #tpu.memory_space<vmem>>, vector<4x128xf32>,
    %c0_9 = arith.constant 0 : index
    %c0_10 = arith.constant 0 : index
    %16 = vector.load %arg6[%c0_9, %c0_10] : memref<4x128xf32, #tpu.memory_space<vmem>>, vector<4x128xf32>
    tpu.vector_store %arg6[%c0_9, %c0_10], %14 {strides = array<i32>} : memref<4x128xf32, #tpu.memory_space<vmem>>, vector<4x128xf32>,
    %c0_i32_11 = arith.constant 0 : i32
    %17 = arith.cmpi eq, %arg1, %c0_i32_11 : i32
    %18 = arith.extui %17 : i1 to i32
    %c0_i32_12 = arith.constant 0 : i32
    %19 = arith.cmpi ne, %18, %c0_i32_12 : i32
    scf.if %19 {
      %cst = arith.constant dense<0.000000e+00> : vector<4xf32>
      %20 = vector.multi_reduction <add>, %12, %cst [1] : vector<4x128xf32> to vector<4xf32>
      %21 = vector.shape_cast %20 : vector<4xf32> to vector<4x1xf32>
      %c0_13 = arith.constant 0 : index
      %c0_14 = arith.constant 0 : index
      %c0_15 = arith.constant 0 : index
      %22 = vector.load %arg3[%c0_13, %c0_14, %c0_15] : memref<1x4x1xf32, #tpu.memory_space<vmem>>, vector<1x4x1xf32>
      %23 = vector.shape_cast %22 : vector<1x4x1xf32> to vector<4x1xf32>
      %24 = vector.shape_cast %21 : vector<4x1xf32> to vector<1x4x1xf32>
      tpu.vector_store %arg3[%c0_13, %c0_14, %c0_15], %24 {strides = array<i32>} : memref<1x4x1xf32, #tpu.memory_space<vmem>>, vector<1x4x1xf32>,
      %cst_16 = arith.constant dense<0.000000e+00> : vector<4xf32>
      %25 = vector.multi_reduction <add>, %14, %cst_16 [1] : vector<4x128xf32> to vector<4xf32>
      %26 = vector.shape_cast %25 : vector<4xf32> to vector<4x1xf32>
      %c0_17 = arith.constant 0 : index
      %c0_18 = arith.constant 0 : index
      %c0_19 = arith.constant 0 : index
      %27 = vector.load %arg4[%c0_17, %c0_18, %c0_19] : memref<1x4x1xf32, #tpu.memory_space<vmem>>, vector<1x4x1xf32>
      %28 = vector.shape_cast %27 : vector<1x4x1xf32> to vector<4x1xf32>
      %29 = vector.shape_cast %26 : vector<4x1xf32> to vector<1x4x1xf32>
      tpu.vector_store %arg4[%c0_17, %c0_18, %c0_19], %29 {strides = array<i32>} : memref<1x4x1xf32, #tpu.memory_space<vmem>>, vector<1x4x1xf32>,
    } else {
    }
    return
  }
  func.func @transform_0(%arg0: i32, %arg1: i32) -> (i32, i32, i32) {
    %c0_i32 = arith.constant 0 : i32
    %c0_i32_0 = arith.constant 0 : i32
    return %arg0, %c0_i32, %arg1 : i32, i32, i32
  }
  func.func @transform_1(%arg0: i32, %arg1: i32) -> (i32, i32, i32) {
    %c0_i32 = arith.constant 0 : i32
    %c0_i32_0 = arith.constant 0 : i32
    %c0_i32_1 = arith.constant 0 : i32
    return %arg0, %c0_i32, %c0_i32_0 : i32, i32, i32
  }
  func.func @transform_2(%arg0: i32, %arg1: i32) -> (i32, i32, i32) {
    %c0_i32 = arith.constant 0 : i32
    %c0_i32_0 = arith.constant 0 : i32
    %c0_i32_1 = arith.constant 0 : i32
    return %arg0, %c0_i32, %c0_i32_0 : i32, i32, i32
  }
}

module attributes {stable_mosaic.version = 11 : i64} {
  func.func @_norm_kernel(%arg0: i32, %arg1: i32, %arg2: memref<4x1xf32, #tpu.memory_space<vmem>>, %arg3: memref<4x1xf32, #tpu.memory_space<vmem>>, %arg4: memref<1x4x256xf32, #tpu.memory_space<vmem>>, %arg5: memref<1x4x256xf32, #tpu.memory_space<vmem>>) attributes {dimension_semantics = [#tpu.dimension_semantics<parallel>, #tpu.dimension_semantics<parallel>], iteration_bounds = array<i64: 2, 1>, scalar_prefetch = 0 : i64, scratch_operands = 0 : i64, tpu.core_type = #tpu.core_type<tc>, window_params = [{pipeline_mode = #tpu.pipeline_mode<synchronous>, transform_indices = @transform_0, window_bounds = array<i64: 4, 1>}, {pipeline_mode = #tpu.pipeline_mode<synchronous>, transform_indices = @transform_1, window_bounds = array<i64: 4, 1>}, {transform_indices = @transform_2, window_bounds = array<i64: 1, 4, 256>}, {transform_indices = @transform_3, window_bounds = array<i64: 1, 4, 256>}]} {
    %c0 = arith.constant 0 : index
    %c0_0 = arith.constant 0 : index
    %c0_1 = arith.constant 0 : index
    %0 = vector.load %arg4[%c0, %c0_0, %c0_1] : memref<1x4x256xf32, #tpu.memory_space<vmem>>, vector<1x4x256xf32>
    %1 = vector.shape_cast %0 : vector<1x4x256xf32> to vector<4x256xf32>
    %c0_2 = arith.constant 0 : index
    %c0_3 = arith.constant 0 : index
    %2 = vector.load %arg2[%c0_2, %c0_3] : memref<4x1xf32, #tpu.memory_space<vmem>>, vector<4x1xf32>
    %3 = vector.broadcast %2 : vector<4x1xf32> to vector<4x256xf32>
    %4 = arith.mulf %1, %3 : vector<4x256xf32>
    %c0_4 = arith.constant 0 : index
    %c0_5 = arith.constant 0 : index
    %5 = vector.load %arg3[%c0_4, %c0_5] : memref<4x1xf32, #tpu.memory_space<vmem>>, vector<4x1xf32>
    %6 = vector.broadcast %5 : vector<4x1xf32> to vector<4x256xf32>
    %7 = arith.addf %4, %6 : vector<4x256xf32>
    %c0_6 = arith.constant 0 : index
    %c0_7 = arith.constant 0 : index
    %c0_8 = arith.constant 0 : index
    %8 = vector.load %arg5[%c0_6, %c0_7, %c0_8] : memref<1x4x256xf32, #tpu.memory_space<vmem>>, vector<1x4x256xf32>
    %9 = vector.shape_cast %8 : vector<1x4x256xf32> to vector<4x256xf32>
    %10 = vector.shape_cast %7 : vector<4x256xf32> to vector<1x4x256xf32>
    tpu.vector_store %arg5[%c0_6, %c0_7, %c0_8], %10 {strides = array<i32>} : memref<1x4x256xf32, #tpu.memory_space<vmem>>, vector<1x4x256xf32>,
    return
  }
  func.func @transform_0(%arg0: i32, %arg1: i32) -> (i32, i32) {
    %c0_i32 = arith.constant 0 : i32
    %c0_i32_0 = arith.constant 0 : i32
    %c0_i32_1 = arith.constant 0 : i32
    return %c0_i32, %c0_i32_0 : i32, i32
  }
  func.func @transform_1(%arg0: i32, %arg1: i32) -> (i32, i32) {
    %c0_i32 = arith.constant 0 : i32
    %c0_i32_0 = arith.constant 0 : i32
    %c0_i32_1 = arith.constant 0 : i32
    return %c0_i32, %c0_i32_0 : i32, i32
  }
  func.func @transform_2(%arg0: i32, %arg1: i32) -> (i32, i32, i32) {
    %c0_i32 = arith.constant 0 : i32
    %c0_i32_0 = arith.constant 0 : i32
    return %arg0, %c0_i32, %arg1 : i32, i32, i32
  }
  func.func @transform_3(%arg0: i32, %arg1: i32) -> (i32, i32, i32) {
    %c0_i32 = arith.constant 0 : i32
    %c0_i32_0 = arith.constant 0 : i32
    return %arg0, %c0_i32, %arg1 : i32, i32, i32
  }
}

</mosaic_0001>

<llo_original>
// kernel: dual_bn2d.2
$region0: #{dual_bn2d.2}
  #allocation0 [shape = 'u32[]', space=smem, size = 0x4, offset = 0x4, fixed_abs, tag = 'smem constant byte address 0x4 - core index']
  #allocation1 [shape = 'u32[144,128]{1,0:T(1,128)}', space=vmem, size = 0x12000, scoped, tag = 'internal scratch']
  #allocation2 [shape = 'f32[4,128]{1,0:T(4,128)}', space=vmem, size = 0x800, scoped, tag = 'scratch operand']
  #allocation3 [shape = 'f32[4,128]{1,0:T(4,128)}', space=vmem, size = 0x800, scoped, tag = 'scratch operand']
  %s0 = inlined_call_operand.vmem [shape: f32[2,4,256], index: 0, kind: input, shape index: {}]
  %s1 = inlined_call_operand.vmem [shape: f32[2,4,1], index: 1, kind: output, shape index: {0}]
  %s2 = inlined_call_operand.vmem [shape: f32[2,4,1], index: 2, kind: output, shape index: {1}]
  %3 = xla_tuple %s1, %s2
  %s4 = sld [smem:[#allocation0]]
  $region53: #{dual_bn2d.2} parent=0
    _
  %s6 = ssub.s32 1, %s4
  %s7 = scalar_select 0, %s6, %s4
  loop: start=0, step=1, limit=4
  $region2: #{dual_bn2d.2} parent=0 // loop_pre_header
    _
  $region3: #{dual_bn2d.2} parent=0 // loop_header
    %s9 = sphi 0, %s13
    %p10 = scmp.ge.s32.totalorder %s9, 4
    %s16 = sphi 0, %s28
    %s17 = sphi 0, %s24
    %s18 = sphi 0, %s16
    %s19 = sphi 0, %s17
    %s20 = sphi 0, %s18
    %s21 = sphi 0, %s19
    %s33 = sphi 0, %s35
    %s36 = sphi 0, %s33
    %s37 = sphi 0, %s36
    %s53 = sphi 0, %s37
    %s59 = sphi 0, %s61
    %s62 = sphi 0, %s59
    %s63 = sphi 0, %s62
    %s79 = sphi 0, %s63
    %s85 = sphi 0, %s87
    %s88 = sphi 0, %s85
    %s89 = sphi 0, %s88
    %s105 = sphi 0, %s89
  $region4: #{dual_bn2d.2} parent=0 // loop_header_branch
    %12 = sbr.rel (%p10) target = $region8
  $region5: #{dual_bn2d.2} parent=0 // loop_body
    %s14 = ssub.s32 %s9, 1
    %s15 = ssub.s32 %s9, 2
    %s22 = sadd.s32 1, %s17
    %p23 = scmp.ge.s32.totalorder %s22, 1
    %s24 = scalar_select %p23, 0, %s22
    %s25 = sadd.s32 1, %s16
    %s26 = scalar_select %p23, %s25, %s16
    %p27 = scmp.ge.s32.totalorder %s26, 2
    %s28 = scalar_select %p27, 0, %s26
    %s29 = ssub.s32 %s16, %s28
    %s30 = ssub.s32 %s17, %s24
    %s31 = sor.u32 %s29, %s30
    %p32 = scmp.eq.s32.totalorder %s31, 0
    %s34 = sadd.s32 %s33, 1
    %s35 = scalar_select %p32, %s33, %s34
    %p38 = pneg %p32
    %p39 = scmp.eq.s32.totalorder %s9, 1
    %p40 = por %p38, %p39
    %p41 = scmp.ne.s32.totalorder %s33, %s36
    %p42 = scmp.eq.s32.totalorder %s9, 0
    %p43 = por %p41, %p42
    %p44 = scmp.ne.s32.totalorder %s33, %s36
    %p45 = scmp.eq.s32.totalorder %s14, 1
    %p46 = por %p44, %p45
    %p47 = scmp.ne.s32.totalorder %s36, %s37
    %p48 = scmp.eq.s32.totalorder %s14, 0
    %p49 = por %p47, %p48
    %p50 = scmp.ne.s32.totalorder %s36, %s37
    %p51 = scmp.eq.s32.totalorder %s15, 1
    %p52 = por %p50, %p51
    %p54 = scmp.ne.s32.totalorder %s37, %s53
    %p55 = scmp.eq.s32.totalorder %s15, 0
    %p56 = por %p54, %p55
    %s57 = ssub.s32 %s16, %s28
    %p58 = scmp.eq.s32.totalorder %s57, 0
    %s60 = sadd.s32 %s59, 1
    %s61 = scalar_select %p58, %s59, %s60
    %p64 = pneg %p58
    %p65 = scmp.eq.s32.totalorder %s9, 1
    %p66 = por %p64, %p65
    %p67 = scmp.ne.s32.totalorder %s59, %s62
    %p68 = scmp.eq.s32.totalorder %s9, 0
    %p69 = por %p67, %p68
    %p70 = scmp.ne.s32.totalorder %s59, %s62
    %p71 = scmp.eq.s32.totalorder %s14, 1
    %p72 = por %p70, %p71
    %p73 = scmp.ne.s32.totalorder %s62, %s63
    %p74 = scmp.eq.s32.totalorder %s14, 0
    %p75 = por %p73, %p74
    %p76 = scmp.ne.s32.totalorder %s62, %s63
    %p77 = scmp.eq.s32.totalorder %s15, 1
    %p78 = por %p76, %p77
    %p80 = scmp.ne.s32.totalorder %s63, %s79
    %p81 = scmp.eq.s32.totalorder %s15, 0
    %p82 = por %p80, %p81
    %s83 = ssub.s32 %s16, %s28
    %p84 = scmp.eq.s32.totalorder %s83, 0
    %s86 = sadd.s32 %s85, 1
    %s87 = scalar_select %p84, %s85, %s86
    %p90 = pneg %p84
    %p91 = scmp.eq.s32.totalorder %s9, 1
    %p92 = por %p90, %p91
    %p93 = scmp.ne.s32.totalorder %s85, %s88
    %p94 = scmp.eq.s32.totalorder %s9, 0
    %p95 = por %p93, %p94
    %p96 = scmp.ne.s32.totalorder %s85, %s88
    %p97 = scmp.eq.s32.totalorder %s14, 1
    %p98 = por %p96, %p97
    %p99 = scmp.ne.s32.totalorder %s88, %s89
    %p100 = scmp.eq.s32.totalorder %s14, 0
    %p101 = por %p99, %p100
    %p102 = scmp.ne.s32.totalorder %s88, %s89
    %p103 = scmp.eq.s32.totalorder %s15, 1
    %p104 = por %p102, %p103
    %p106 = scmp.ne.s32.totalorder %s89, %s105
    %p107 = scmp.eq.s32.totalorder %s15, 0
    %p108 = por %p106, %p107
    %p109 = scmp.le.s32.totalorder 1, %s9
    %p110 = scmp.lt.s32.totalorder %s9, 3
    %p111 = pnand %p109, %p110
    %p112 = pneg %p111
    // Predicated region
    $region9: #{dual_bn2d.2} parent=5 // pred_check
      _
    $region10: #{dual_bn2d.2} parent=5 // pred_check_branch
      %114 = sbr.rel (%p111) target = $region12
    $region11: #{dual_bn2d.2} parent=5 // pred_region
      %s115 = ssub.s32 %s9, 1
    $region12: #{dual_bn2d.2} parent=5 // pred_fallthru
      _
    %p116 = scmp.lt.s32.totalorder %s9, 2
    // Predicated region
    $region13: #{dual_bn2d.2} parent=5 // pred_check
      %p117 = pneg %p116
    $region14: #{dual_bn2d.2} parent=5 // pred_check_branch
      %119 = sbr.rel (%p117) target = $region16
    $region15: #{dual_bn2d.2} parent=5 // pred_region
      // Predicated region
      $region17: #{dual_bn2d.2} parent=15 // pred_check
        %p120 = pneg %p43
      $region18: #{dual_bn2d.2} parent=15 // pred_check_branch
        %122 = sbr.rel (%p120) target = $region20
      $region19: #{dual_bn2d.2} parent=15 // pred_region
        %s123 = smul.u32 2, %s17
        %p124 = scmp.lt.s32.totalorder %s16, 1
        %s125 = scalar_select %p124, %s16, 1
        %p126 = scmp.lt.s32.totalorder %s123, 1
        %s127 = scalar_select %p126, %s123, 1
        %s128 = smul.addr %s125, 2
        %s129 = sadd.s32 %s127, %s128
        %s130 = smul.addr %s129, 4
        %s131 = scalar_lea.vmem %s0, %s130
        %s132 = smul.u32 2, %s17
      $region20: #{dual_bn2d.2} parent=15 // pred_fallthru
        _
    $region16: #{dual_bn2d.2} parent=5 // pred_fallthru
      _
    %p133 = scmp.le.s32.totalorder 1, %s9
    %p134 = scmp.lt.s32.totalorder %s9, 3
    %p135 = pnand %p133, %p134
    %p136 = pneg %p135
    // Predicated region
    $region21: #{dual_bn2d.2} parent=5 // pred_check
      _
    $region22: #{dual_bn2d.2} parent=5 // pred_check_branch
      %138 = sbr.rel (%p135) target = $region24
    $region23: #{dual_bn2d.2} parent=5 // pred_region
      %s139 = ssub.s32 %s9, 1
      %s140 = smul.u32 2, %s19
      %p141 = scmp.lt.s32.totalorder %s18, 1
      %s142 = scalar_select %p141, %s18, 1
      %p143 = scmp.lt.s32.totalorder %s140, 1
      %s144 = scalar_select %p143, %s140, 1
      %s145 = smul.addr %s142, 2
      %s146 = sadd.s32 %s144, %s145
      %s147 = smul.addr %s146, 4
      %s148 = scalar_lea.vmem %s0, %s147
      %p149 = pneg %p49
      %p150 = pneg %p46
      %p151 = pneg %p75
      %p152 = pneg %p72
      %p153 = scmp.lt.s32.totalorder %s18, 1
      %s154 = scalar_select %p153, %s18, 1
      %s155 = smul.addr %s154, 4
      %s156 = scalar_lea.vmem %s1, %s155
      %p157 = pneg %p101
      %p158 = pneg %p98
      %p159 = scmp.lt.s32.totalorder %s18, 1
      %s160 = scalar_select %p159, %s18, 1
      %s161 = smul.addr %s160, 4
      %s162 = scalar_lea.vmem %s2, %s161
      %s163 = smul.u32 2, %s19
      %p164 = scmp.lt.s32.totalorder %s18, 1
      %s165 = scalar_select %p164, %s18, 1
      %p166 = scmp.lt.s32.totalorder %s163, 1
      %s167 = scalar_select %p166, %s163, 1
      %s168 = smul.addr %s165, 2
      %s169 = sadd.s32 %s167, %s168
      %s170 = smul.addr %s169, 4
      %s171 = scalar_lea.vmem %s0, %s170
      %s172 = smul.u32 2, %s19
      %p173 = scmp.lt.s32.totalorder %s18, 1
      %s174 = scalar_select %p173, %s18, 1
      %s175 = smul.addr %s174, 4
      %s176 = scalar_lea.vmem %s1, %s175
      %p177 = scmp.lt.s32.totalorder %s18, 1
      %s178 = scalar_select %p177, %s18, 1
      %s179 = smul.addr %s178, 4
      %s180 = scalar_lea.vmem %s2, %s179
      %p181 = scmp.eq.s32.totalorder %s19, 0
      // Predicated region
      $region25: #{dual_bn2d.2} parent=23 // pred_check
        %p182 = pneg %p181
      $region26: #{dual_bn2d.2} parent=23 // pred_check_branch
        %184 = sbr.rel (%p182) target = $region28
      $region27: #{dual_bn2d.2} parent=23 // pred_region
        %185 = vst [vmem:[#allocation2] sm:$0xf] 0.0
        %186 = vst [vmem:[#allocation3] sm:$0xf] 0.0
      $region28: #{dual_bn2d.2} parent=23 // pred_fallthru
        _
      %v187 = vld [vmem:[%s171] sm:$0xff]
      %v188 = vld [vmem:[#allocation2] sm:$0xf]
      %v189 = vld [vmem:[#allocation3] sm:$0xf]
      %v190 = vadd.f32 %v188, %v187
      %v191 = vmul.f32 %v187, %v187
      %v192 = vadd.f32 %v189, %v191
      %v194 = vcombine.high %v187, %v187
      %v196 = vadd.f32 %v190, %v194
      %v197 = vrot.slane %v187, 4
      %v199 = vmul.f32 %v197, %v197
      %v200 = vadd.f32 %v192, %v199
      %201 = vst [vmem:[#allocation2] sm:$0xf] %v196
      %202 = vst [vmem:[#allocation3] sm:$0xf] %v200
      // Predicated region
      $region29: #{dual_bn2d.2} parent=23 // pred_check
        %p203 = pneg %p181
      $region30: #{dual_bn2d.2} parent=23 // pred_check_branch
        %205 = sbr.rel (%p203) target = $region32
      $region31: #{dual_bn2d.2} parent=23 // pred_region
        %vm206 = vcmask 1043456
        %v207 = vsel %vm206, %v196, 0.0
        %208 = vadd.xlane.f32.xlu0 %v207
        %v209 = vpop.xlane.xlu0 %208
        %vm210 = vcmask 3072
        %211 = vst.msk [vmem:[%s176] sm:$0xf] %vm210, %v209
        %v212 = vsel %vm206, %v200, 0.0
        %213 = vadd.xlane.f32.xlu0 %v212
        %v214 = vpop.xlane.xlu0 %213
        %215 = vst.msk [vmem:[%s180] sm:$0xf] %vm210, %v214
      $region32: #{dual_bn2d.2} parent=23 // pred_fallthru
        _
      %p216 = scmp.lt.s32.totalorder %s18, 1
      %s217 = scalar_select %p216, %s18, 1
      %s218 = smul.addr %s217, 4
      %s219 = scalar_lea.vmem %s1, %s218
      %p220 = scmp.lt.s32.totalorder %s18, 1
      %s221 = scalar_select %p220, %s18, 1
      %s222 = smul.addr %s221, 4
      %s223 = scalar_lea.vmem %s2, %s222
      // Predicated region
      $region33: #{dual_bn2d.2} parent=23 // pred_check
        %p224 = pneg %p72
      $region34: #{dual_bn2d.2} parent=23 // pred_check_branch
        %226 = sbr.rel (%p224) target = $region36
      $region35: #{dual_bn2d.2} parent=23 // pred_region
        _
      $region36: #{dual_bn2d.2} parent=23 // pred_fallthru
        _
      // Predicated region
      $region37: #{dual_bn2d.2} parent=23 // pred_check
        %p227 = pneg %p98
      $region38: #{dual_bn2d.2} parent=23 // pred_check_branch
        %229 = sbr.rel (%p227) target = $region40
      $region39: #{dual_bn2d.2} parent=23 // pred_region
        _
      $region40: #{dual_bn2d.2} parent=23 // pred_fallthru
        _
    $region24: #{dual_bn2d.2} parent=5 // pred_fallthru
      _
    %p230 = scmp.le.s32.totalorder 2, %s9
    // Predicated region
    $region41: #{dual_bn2d.2} parent=5 // pred_check
      %p231 = pneg %p230
    $region42: #{dual_bn2d.2} parent=5 // pred_check_branch
      %233 = sbr.rel (%p231) target = $region44
    $region43: #{dual_bn2d.2} parent=5 // pred_region
      %s234 = ssub.s32 %s9, 2
      // Predicated region
      $region45: #{dual_bn2d.2} parent=43 // pred_check
        %p235 = pneg %p78
      $region46: #{dual_bn2d.2} parent=43 // pred_check_branch
        %237 = sbr.rel (%p235) target = $region48
      $region47: #{dual_bn2d.2} parent=43 // pred_region
        %p238 = scmp.lt.s32.totalorder %s20, 1
        %s239 = scalar_select %p238, %s20, 1
        %s240 = smul.addr %s239, 4
        %s241 = scalar_lea.vmem %s1, %s240
      $region48: #{dual_bn2d.2} parent=43 // pred_fallthru
        _
      // Predicated region
      $region49: #{dual_bn2d.2} parent=43 // pred_check
        %p242 = pneg %p104
      $region50: #{dual_bn2d.2} parent=43 // pred_check_branch
        %244 = sbr.rel (%p242) target = $region52
      $region51: #{dual_bn2d.2} parent=43 // pred_region
        %p245 = scmp.lt.s32.totalorder %s20, 1
        %s246 = scalar_select %p245, %s20, 1
        %s247 = smul.addr %s246, 4
        %s248 = scalar_lea.vmem %s2, %s247
      $region52: #{dual_bn2d.2} parent=43 // pred_fallthru
        _
    $region44: #{dual_bn2d.2} parent=5 // pred_fallthru
      _
  $region6: #{dual_bn2d.2} parent=0 // loop_footer
    %s13 = sadd.s32 1, %s9
  $region7: #{dual_bn2d.2} parent=0 // loop_footer_branch
    %8 = sbr.rel target = $region3
  $region8: #{dual_bn2d.2} parent=0 // loop_exit
    _

// kernel: dual_bn2d.3
$region0: #{dual_bn2d.3}
  #allocation0 [shape = 'u32[]', space=smem, size = 0x4, offset = 0x4, fixed_abs, tag = 'smem constant byte address 0x4 - core index']
  #allocation1 [shape = 'u32[144,128]{1,0:T(1,128)}', space=vmem, size = 0x12000, scoped, tag = 'internal scratch']
  %s0 = inlined_call_operand.vmem [shape: f32[4,1], index: 0, kind: input, shape index: {}]
  %s1 = inlined_call_operand.vmem [shape: f32[4,1], index: 1, kind: input, shape index: {}]
  %s2 = inlined_call_operand.vmem [shape: f32[2,4,256], index: 2, kind: input, shape index: {}]
  %s3 = inlined_call_operand.vmem [shape: f32[2,4,256], index: 3, kind: output, shape index: {}]
  %s4 = sld [smem:[#allocation0]]
  $region45: #{dual_bn2d.3} parent=0
    _
  %s6 = ssub.s32 1, %s4
  %s7 = scalar_select 0, %s6, %s4
  loop: start=0, step=1, limit=4
  $region2: #{dual_bn2d.3} parent=0 // loop_pre_header
    _
  $region3: #{dual_bn2d.3} parent=0 // loop_header
    %s9 = sphi 0, %s13
    %p10 = scmp.ge.s32.totalorder %s9, 4
    %s16 = sphi 0, %s28
    %s17 = sphi 0, %s24
    %s18 = sphi 0, %s16
    %s19 = sphi 0, %s17
    %s20 = sphi 0, %s18
    %s21 = sphi 0, %s19
    %s29 = sphi 0, %s29
    %s31 = sphi 0, %s29
    %s32 = sphi 0, %s31
    %s46 = sphi 0, %s32
    %s50 = sphi 0, %s50
    %s52 = sphi 0, %s50
    %s53 = sphi 0, %s52
    %s67 = sphi 0, %s53
    %s75 = sphi 0, %s77
    %s78 = sphi 0, %s75
    %s79 = sphi 0, %s78
    %s95 = sphi 0, %s79
    %s103 = sphi 0, %s105
    %s106 = sphi 0, %s103
    %s107 = sphi 0, %s106
    %s123 = sphi 0, %s107
  $region4: #{dual_bn2d.3} parent=0 // loop_header_branch
    %12 = sbr.rel (%p10) target = $region8
  $region5: #{dual_bn2d.3} parent=0 // loop_body
    %s14 = ssub.s32 %s9, 1
    %s15 = ssub.s32 %s9, 2
    %s22 = sadd.s32 1, %s17
    %p23 = scmp.ge.s32.totalorder %s22, 1
    %s24 = scalar_select %p23, 0, %s22
    %s25 = sadd.s32 1, %s16
    %s26 = scalar_select %p23, %s25, %s16
    %p27 = scmp.ge.s32.totalorder %s26, 2
    %s28 = scalar_select %p27, 0, %s26
    %s30 = sadd.s32 %s29, 1
    %p33 = scmp.eq.s32.totalorder %s9, 1
    %p34 = scmp.ne.s32.totalorder %s29, %s31
    %p35 = scmp.eq.s32.totalorder %s9, 0
    %p36 = por %p34, %p35
    %p37 = scmp.ne.s32.totalorder %s29, %s31
    %p38 = scmp.eq.s32.totalorder %s14, 1
    %p39 = por %p37, %p38
    %p40 = scmp.ne.s32.totalorder %s31, %s32
    %p41 = scmp.eq.s32.totalorder %s14, 0
    %p42 = por %p40, %p41
    %p43 = scmp.ne.s32.totalorder %s31, %s32
    %p44 = scmp.eq.s32.totalorder %s15, 1
    %p45 = por %p43, %p44
    %p47 = scmp.ne.s32.totalorder %s32, %s46
    %p48 = scmp.eq.s32.totalorder %s15, 0
    %p49 = por %p47, %p48
    %s51 = sadd.s32 %s50, 1
    %p54 = scmp.eq.s32.totalorder %s9, 1
    %p55 = scmp.ne.s32.totalorder %s50, %s52
    %p56 = scmp.eq.s32.totalorder %s9, 0
    %p57 = por %p55, %p56
    %p58 = scmp.ne.s32.totalorder %s50, %s52
    %p59 = scmp.eq.s32.totalorder %s14, 1
    %p60 = por %p58, %p59
    %p61 = scmp.ne.s32.totalorder %s52, %s53
    %p62 = scmp.eq.s32.totalorder %s14, 0
    %p63 = por %p61, %p62
    %p64 = scmp.ne.s32.totalorder %s52, %s53
    %p65 = scmp.eq.s32.totalorder %s15, 1
    %p66 = por %p64, %p65
    %p68 = scmp.ne.s32.totalorder %s53, %s67
    %p69 = scmp.eq.s32.totalorder %s15, 0
    %p70 = por %p68, %p69
    %s71 = ssub.s32 %s16, %s28
    %s72 = ssub.s32 %s17, %s24
    %s73 = sor.u32 %s71, %s72
    %p74 = scmp.eq.s32.totalorder %s73, 0
    %s76 = sadd.s32 %s75, 1
    %s77 = scalar_select %p74, %s75, %s76
    %p80 = pneg %p74
    %p81 = scmp.eq.s32.totalorder %s9, 1
    %p82 = por %p80, %p81
    %p83 = scmp.ne.s32.totalorder %s75, %s78
    %p84 = scmp.eq.s32.totalorder %s9, 0
    %p85 = por %p83, %p84
    %p86 = scmp.ne.s32.totalorder %s75, %s78
    %p87 = scmp.eq.s32.totalorder %s14, 1
    %p88 = por %p86, %p87
    %p89 = scmp.ne.s32.totalorder %s78, %s79
    %p90 = scmp.eq.s32.totalorder %s14, 0
    %p91 = por %p89, %p90
    %p92 = scmp.ne.s32.totalorder %s78, %s79
    %p93 = scmp.eq.s32.totalorder %s15, 1
    %p94 = por %p92, %p93
    %p96 = scmp.ne.s32.totalorder %s79, %s95
    %p97 = scmp.eq.s32.totalorder %s15, 0
    %p98 = por %p96, %p97
    %s99 = ssub.s32 %s16, %s28
    %s100 = ssub.s32 %s17, %s24
    %s101 = sor.u32 %s99, %s100
    %p102 = scmp.eq.s32.totalorder %s101, 0
    %s104 = sadd.s32 %s103, 1
    %s105 = scalar_select %p102, %s103, %s104
    %p108 = pneg %p102
    %p109 = scmp.eq.s32.totalorder %s9, 1
    %p110 = por %p108, %p109
    %p111 = scmp.ne.s32.totalorder %s103, %s106
    %p112 = scmp.eq.s32.totalorder %s9, 0
    %p113 = por %p111, %p112
    %p114 = scmp.ne.s32.totalorder %s103, %s106
    %p115 = scmp.eq.s32.totalorder %s14, 1
    %p116 = por %p114, %p115
    %p117 = scmp.ne.s32.totalorder %s106, %s107
    %p118 = scmp.eq.s32.totalorder %s14, 0
    %p119 = por %p117, %p118
    %p120 = scmp.ne.s32.totalorder %s106, %s107
    %p121 = scmp.eq.s32.totalorder %s15, 1
    %p122 = por %p120, %p121
    %p124 = scmp.ne.s32.totalorder %s107, %s123
    %p125 = scmp.eq.s32.totalorder %s15, 0
    %p126 = por %p124, %p125
    %p127 = scmp.le.s32.totalorder 1, %s9
    %p128 = scmp.lt.s32.totalorder %s9, 3
    %p129 = pnand %p127, %p128
    %p130 = pneg %p129
    // Predicated region
    $region9: #{dual_bn2d.3} parent=5 // pred_check
      _
    $region10: #{dual_bn2d.3} parent=5 // pred_check_branch
      %132 = sbr.rel (%p129) target = $region12
    $region11: #{dual_bn2d.3} parent=5 // pred_region
      %s133 = ssub.s32 %s9, 1
      // Predicated region
      $region13: #{dual_bn2d.3} parent=11 // pred_check
        %p134 = pneg %p42
      $region14: #{dual_bn2d.3} parent=11 // pred_check_branch
        %136 = sbr.rel (%p134) target = $region16
      $region15: #{dual_bn2d.3} parent=11 // pred_region
        _
      $region16: #{dual_bn2d.3} parent=11 // pred_fallthru
        _
      // Predicated region
      $region17: #{dual_bn2d.3} parent=11 // pred_check
        %p137 = pneg %p63
      $region18: #{dual_bn2d.3} parent=11 // pred_check_branch
        %139 = sbr.rel (%p137) target = $region20
      $region19: #{dual_bn2d.3} parent=11 // pred_region
        _
      $region20: #{dual_bn2d.3} parent=11 // pred_fallthru
        _
    $region12: #{dual_bn2d.3} parent=5 // pred_fallthru
      _
    %p140 = scmp.lt.s32.totalorder %s9, 2
    // Predicated region
    $region21: #{dual_bn2d.3} parent=5 // pred_check
      %p141 = pneg %p140
    $region22: #{dual_bn2d.3} parent=5 // pred_check_branch
      %143 = sbr.rel (%p141) target = $region24
    $region23: #{dual_bn2d.3} parent=5 // pred_region
      // Predicated region
      $region25: #{dual_bn2d.3} parent=23 // pred_check
        %p144 = pneg %p85
      $region26: #{dual_bn2d.3} parent=23 // pred_check_branch
        %146 = sbr.rel (%p144) target = $region28
      $region27: #{dual_bn2d.3} parent=23 // pred_region
        %s147 = smul.u32 2, %s17
        %p148 = scmp.lt.s32.totalorder %s16, 1
        %s149 = scalar_select %p148, %s16, 1
        %p150 = scmp.lt.s32.totalorder %s147, 1
        %s151 = scalar_select %p150, %s147, 1
        %s152 = smul.addr %s149, 2
        %s153 = sadd.s32 %s151, %s152
        %s154 = smul.addr %s153, 4
        %s155 = scalar_lea.vmem %s2, %s154
        %s156 = smul.u32 2, %s17
      $region28: #{dual_bn2d.3} parent=23 // pred_fallthru
        _
    $region24: #{dual_bn2d.3} parent=5 // pred_fallthru
      _
    %p157 = scmp.le.s32.totalorder 1, %s9
    %p158 = scmp.lt.s32.totalorder %s9, 3
    %p159 = pnand %p157, %p158
    %p160 = pneg %p159
    // Predicated region
    $region29: #{dual_bn2d.3} parent=5 // pred_check
      _
    $region30: #{dual_bn2d.3} parent=5 // pred_check_branch
      %162 = sbr.rel (%p159) target = $region32
    $region31: #{dual_bn2d.3} parent=5 // pred_region
      %s163 = ssub.s32 %s9, 1
      %p164 = pneg %p42
      %p165 = pneg %p39
      %p166 = pneg %p63
      %p167 = pneg %p60
      %s168 = smul.u32 2, %s19
      %p169 = scmp.lt.s32.totalorder %s18, 1
      %s170 = scalar_select %p169, %s18, 1
      %p171 = scmp.lt.s32.totalorder %s168, 1
      %s172 = scalar_select %p171, %s168, 1
      %s173 = smul.addr %s170, 2
      %s174 = sadd.s32 %s172, %s173
      %s175 = smul.addr %s174, 4
      %s176 = scalar_lea.vmem %s2, %s175
      %p177 = pneg %p91
      %p178 = pneg %p88
      %p179 = pneg %p119
      %p180 = pneg %p116
      %s181 = smul.u32 2, %s19
      %p182 = scmp.lt.s32.totalorder %s18, 1
      %s183 = scalar_select %p182, %s18, 1
      %p184 = scmp.lt.s32.totalorder %s181, 1
      %s185 = scalar_select %p184, %s181, 1
      %s186 = smul.addr %s183, 2
      %s187 = sadd.s32 %s185, %s186
      %s188 = smul.addr %s187, 4
      %s189 = scalar_lea.vmem %s3, %s188
      %s190 = smul.u32 2, %s19
      %p191 = scmp.lt.s32.totalorder %s18, 1
      %s192 = scalar_select %p191, %s18, 1
      %p193 = scmp.lt.s32.totalorder %s190, 1
      %s194 = scalar_select %p193, %s190, 1
      %s195 = smul.addr %s192, 2
      %s196 = sadd.s32 %s194, %s195
      %s197 = smul.addr %s196, 4
      %s198 = scalar_lea.vmem %s2, %s197
      %s199 = smul.u32 2, %s19
      %s200 = smul.u32 2, %s19
      %p201 = scmp.lt.s32.totalorder %s18, 1
      %s202 = scalar_select %p201, %s18, 1
      %p203 = scmp.lt.s32.totalorder %s200, 1
      %s204 = scalar_select %p203, %s200, 1
      %s205 = smul.addr %s202, 2
      %s206 = sadd.s32 %s204, %s205
      %s207 = smul.addr %s206, 4
      %s208 = scalar_lea.vmem %s3, %s207
      %s209 = smul.u32 2, %s19
      %v210 = vld [vmem:[%s198] sm:$0xff]
      %v211 = vld [vmem:[%s0] sm:$0xf]
      %213 = vset.pattern.permute.xlu0 0
      %214 = vperm.xlu0 %213, %v211
      %v215 = vpop.permute.xlu0 %214
      %v217 = vunpack.c.l.s4 839922192
      %v218 = vunpack.c.0.s8 %v217
      %v219 = vlaneseq
      %v220 = vshrl.u32 %v219, 7
      %v221 = vsub.s32 %v218, %v220
      %v222 = vrot.slane %v215, %v221
      %v224 = vmul.f32 %v210, %v222
      %v225 = vld [vmem:[%s1] sm:$0xf]
      %227 = vset.pattern.permute.xlu0 0
      %228 = vperm.xlu0 %227, %v225
      %v229 = vpop.permute.xlu0 %228
      %v231 = vunpack.c.l.s4 839922192
      %v232 = vunpack.c.0.s8 %v231
      %v233 = vlaneseq
      %v234 = vshrl.u32 %v233, 7
      %v235 = vsub.s32 %v232, %v234
      %v236 = vrot.slane %v229, %v235
      %v238 = vadd.f32 %v224, %v236
      %239 = vst [vmem:[%s208] sm:$0xff] %v238
      %s240 = smul.u32 2, %s19
      %p241 = scmp.lt.s32.totalorder %s18, 1
      %s242 = scalar_select %p241, %s18, 1
      %p243 = scmp.lt.s32.totalorder %s240, 1
      %s244 = scalar_select %p243, %s240, 1
      %s245 = smul.addr %s242, 2
      %s246 = sadd.s32 %s244, %s245
      %s247 = smul.addr %s246, 4
      %s248 = scalar_lea.vmem %s3, %s247
      // Predicated region
      $region33: #{dual_bn2d.3} parent=31 // pred_check
        %p249 = pneg %p116
      $region34: #{dual_bn2d.3} parent=31 // pred_check_branch
        %251 = sbr.rel (%p249) target = $region36
      $region35: #{dual_bn2d.3} parent=31 // pred_region
        %s252 = smul.u32 2, %s19
      $region36: #{dual_bn2d.3} parent=31 // pred_fallthru
        _
    $region32: #{dual_bn2d.3} parent=5 // pred_fallthru
      _
    %p253 = scmp.le.s32.totalorder 2, %s9
    // Predicated region
    $region37: #{dual_bn2d.3} parent=5 // pred_check
      %p254 = pneg %p253
    $region38: #{dual_bn2d.3} parent=5 // pred_check_branch
      %256 = sbr.rel (%p254) target = $region40
    $region39: #{dual_bn2d.3} parent=5 // pred_region
      %s257 = ssub.s32 %s9, 2
      // Predicated region
      $region41: #{dual_bn2d.3} parent=39 // pred_check
        %p258 = pneg %p122
      $region42: #{dual_bn2d.3} parent=39 // pred_check_branch
        %260 = sbr.rel (%p258) target = $region44
      $region43: #{dual_bn2d.3} parent=39 // pred_region
        %s261 = smul.u32 2, %s21
        %p262 = scmp.lt.s32.totalorder %s20, 1
        %s263 = scalar_select %p262, %s20, 1
        %p264 = scmp.lt.s32.totalorder %s261, 1
        %s265 = scalar_select %p264, %s261, 1
        %s266 = smul.addr %s263, 2
        %s267 = sadd.s32 %s265, %s266
        %s268 = smul.addr %s267, 4
        %s269 = scalar_lea.vmem %s3, %s268
      $region44: #{dual_bn2d.3} parent=39 // pred_fallthru
        _
    $region40: #{dual_bn2d.3} parent=5 // pred_fallthru
      _
  $region6: #{dual_bn2d.3} parent=0 // loop_footer
    %s13 = sadd.s32 1, %s9
  $region7: #{dual_bn2d.3} parent=0 // loop_footer_branch
    %8 = sbr.rel target = $region3
  $region8: #{dual_bn2d.3} parent=0 // loop_exit
    _

</llo_original>
